<compile_context>
chip_gen: v7x
topology: tpu7x:2x2x1
jax: 0.10.0
libtpu: 0.0.40
codegen_flags: <defaults>
</compile_context>

<pallas_src>
import functools

import jax
import jax.numpy as jnp
from jax.experimental import pallas as pl
from jax.experimental.pallas import tpu as pltpu


# ---------------------------------------------------------------------------
# Post-activations (subset of efficientvit's REGISTERED_ACT_DICT).
# build_act(None / unknown) returns None in PyTorch -> identity here.
# ---------------------------------------------------------------------------
def _identity(x):
    return x


def _relu(x):
    return jnp.maximum(x, 0.0)


def _relu6(x):
    return jnp.clip(x, 0.0, 6.0)


def _hswish(x):
    return x * jnp.clip(x + 3.0, 0.0, 6.0) * (1.0 / 6.0)


def _silu(x):
    return x * jax.nn.sigmoid(x)


def _gelu(x):
    return jax.nn.gelu(x)


_ACTS = {
    None: _identity,
    "relu": _relu,
    "relu6": _relu6,
    "hswish": _hswish,
    "silu": _silu,
    "gelu": _gelu,
}
_TRANSCENDENTAL_ACTS = ("silu", "gelu")


# ---------------------------------------------------------------------------
# Fused residual-add + post-activation kernel.
# ---------------------------------------------------------------------------
def _add_act_kernel(a_ref, b_ref, o_ref, *, act):
    a = a_ref[...].astype(jnp.float32)
    b = b_ref[...].astype(jnp.float32)
    o_ref[...] = act(a + b).astype(o_ref.dtype)


def _pick_layout(n, itemsize):
    """Flattened (rows, lanes) layout: lanes a multiple of 128, row blocks sized
    from the chip's VMEM so each buffer is ~1-4 MiB (2 in + 1 out, double
    buffered)."""
    lanes = 128
    for cand in (512, 256, 128):
        if n % cand == 0:
            lanes = cand
            break
    rows = n // lanes

    try:
        vmem = int(pltpu.get_tpu_info().vmem_capacity_bytes)
    except Exception:  # interpret mode / older jax
        vmem = 64 << 20
    # 2 inputs + 1 output, double-buffered -> ~6 live buffers; leave headroom.
    target_block_bytes = min(max(vmem // 48, 1 << 20), 4 << 20)
    max_rows = max(8, target_block_bytes // (lanes * itemsize))

    if rows <= max_rows:
        block_rows = rows                      # full dim: always a legal block
    else:
        block_rows = (max_rows // 8) * 8       # multiple of 8 sublanes
    return rows, lanes, block_rows


def _fused_add_act(a, b, post_act):
    """post_act(a + b), fused in a single Pallas kernel."""
    assert a.shape == b.shape, (a.shape, b.shape)
    act = _ACTS.get(post_act, _identity)
    out_dtype = jnp.result_type(a.dtype, b.dtype)
    orig_shape = a.shape
    n = a.size

    af = a.reshape(-1)
    bf = b.reshape(-1)
    pad = (-n) % 128
    if pad:  # rare: keep lane dim a multiple of 128 (unmasked stores)
        af = jnp.pad(af, (0, pad))
        bf = jnp.pad(bf, (0, pad))
    n_pad = n + pad

    itemsize = max(jnp.dtype(a.dtype).itemsize,
                   jnp.dtype(b.dtype).itemsize,
                   jnp.dtype(out_dtype).itemsize)
    rows, lanes, block_rows = _pick_layout(n_pad, itemsize)

    a2 = af.reshape(rows, lanes)
    b2 = bf.reshape(rows, lanes)

    bytes_accessed = (a2.size * a2.dtype.itemsize
                      + b2.size * b2.dtype.itemsize
                      + n_pad * jnp.dtype(out_dtype).itemsize)
    transcendentals = n_pad if post_act in _TRANSCENDENTAL_ACTS else 0

    out = pl.pallas_call(
        functools.partial(_add_act_kernel, act=act),
        out_shape=jax.ShapeDtypeStruct((rows, lanes), out_dtype),
        grid=(pl.cdiv(rows, block_rows),),
        in_specs=[
            pl.BlockSpec((block_rows, lanes), lambda r: (r, 0)),
            pl.BlockSpec((block_rows, lanes), lambda r: (r, 0)),
        ],
        out_specs=pl.BlockSpec((block_rows, lanes), lambda r: (r, 0)),
        compiler_params=pltpu.CompilerParams(
            dimension_semantics=("parallel",)),
        cost_estimate=pl.CostEstimate(flops=n_pad,
                                      transcendentals=transcendentals,
                                      bytes_accessed=bytes_accessed),
    )(a2, b2)

    out = out.reshape(-1)
    if pad:
        out = out[:n]
    return out.reshape(orig_shape)


# ---------------------------------------------------------------------------
# ResidualBlock.forward
# ---------------------------------------------------------------------------
def residual_block_forward(x, *, main=None, shortcut=None, pre_norm=None,
                           post_act=None):
    """JAX/Pallas mirror of efficientvit ResidualBlock.forward.

    `main`, `shortcut`, `pre_norm` are user-supplied JAX callables (the PyTorch
    module accepts arbitrary sub-modules there). The block's own compute — the
    residual add and the optional post-activation — runs in one fused Pallas
    TPU kernel.
    """
    if main is None:
        return x
    main_in = x if pre_norm is None else pre_norm(x)
    if shortcut is None:
        return main(main_in)           # PyTorch applies no post_act here
    main_out = main(main_in)
    short_out = shortcut(x)
    return _fused_add_act(main_out, short_out, post_act)


# ---------------------------------------------------------------------------
# Demo / correctness checks
# ---------------------------------------------------------------------------
if __name__ == "__main__":
    key = jax.random.PRNGKey(0)
    kx, kw = jax.random.split(key)
    B, C, H, W = 2, 4, 16, 16
    x = jax.random.normal(kx, (B, C, H, W), dtype=jnp.float32)

    # Typical efficientvit usage: ResidualBlock(main=conv block, shortcut=Identity).
    # `main` here is a deterministic 1x1 (pointwise) conv as plain JAX.
    w_pw = jax.random.normal(kw, (C, C), dtype=jnp.float32) * 0.1
    main_fn = lambda t: jnp.einsum("bchw,oc->bohw", t, w_pw)
    identity = lambda t: t

    # 1) main + shortcut + post_act branch (fused Pallas kernel)
    y = jax.block_until_ready(
        residual_block_forward(x, main=main_fn, shortcut=identity,
                               post_act="hswish"))
    ref = _hswish(main_fn(x) + x)
    assert y.shape == x.shape
    assert jnp.allclose(y, ref, atol=1e-5, rtol=1e-5)

    # 2) main + shortcut, post_act=None (build_act(None) -> identity)
    y2 = jax.block_until_ready(
        residual_block_forward(x, main=main_fn, shortcut=identity,
                               post_act=None))
    assert jnp.allclose(y2, main_fn(x) + x, atol=1e-5, rtol=1e-5)

    # 3) main=None branch (res = x) and shortcut=None branch (res = main(x))
    assert jnp.allclose(residual_block_forward(x), x)
    assert jnp.allclose(residual_block_forward(x, main=main_fn),
                        main_fn(x), atol=1e-5, rtol=1e-5)

    # 4) bf16 inputs through the fused kernel (f32 accumulate inside)
    xb = x.astype(jnp.bfloat16)
    main_b = lambda t: t * jnp.bfloat16(0.5)
    yb = jax.block_until_ready(
        residual_block_forward(xb, main=main_b, shortcut=identity,
                               post_act="relu"))
    mo = main_b(xb)
    refb = jnp.maximum(mo.astype(jnp.float32) + xb.astype(jnp.float32),
                       0.0).astype(jnp.bfloat16)
    assert jnp.allclose(yb.astype(jnp.float32), refb.astype(jnp.float32))

    print("KERNEL_OK")
</pallas_src>

<mosaic_0001>
module attributes {stable_mosaic.version = 11 : i64} {
  func.func @_add_act_kernel(%arg0: i32, %arg1: memref<4x512xf32, #tpu.memory_space<vmem>>, %arg2: memref<4x512xf32, #tpu.memory_space<vmem>>, %arg3: memref<4x512xf32, #tpu.memory_space<vmem>>) attributes {dimension_semantics = [#tpu.dimension_semantics<parallel>], iteration_bounds = array<i64: 1>, scalar_prefetch = 0 : i64, scratch_operands = 0 : i64, tpu.core_type = #tpu.core_type<tc>, window_params = [{transform_indices = @transform_0, window_bounds = array<i64: 4, 512>}, {transform_indices = @transform_1, window_bounds = array<i64: 4, 512>}, {transform_indices = @transform_2, window_bounds = array<i64: 4, 512>}]} {
    %c0 = arith.constant 0 : index
    %c0_0 = arith.constant 0 : index
    %0 = vector.load %arg1[%c0, %c0_0] : memref<4x512xf32, #tpu.memory_space<vmem>>, vector<4x512xf32>
    %c0_1 = arith.constant 0 : index
    %c0_2 = arith.constant 0 : index
    %1 = vector.load %arg2[%c0_1, %c0_2] : memref<4x512xf32, #tpu.memory_space<vmem>>, vector<4x512xf32>
    %2 = arith.addf %0, %1 : vector<4x512xf32>
    %cst = arith.constant 3.000000e+00 : f32
    %3 = vector.broadcast %cst : f32 to vector<4x512xf32>
    %4 = arith.addf %2, %3 : vector<4x512xf32>
    %cst_3 = arith.constant 0.000000e+00 : f32
    %cst_4 = arith.constant 6.000000e+00 : f32
    %5 = vector.broadcast %cst_3 : f32 to vector<4x512xf32>
    %6 = arith.maximumf %5, %4 : vector<4x512xf32>
    %7 = vector.broadcast %cst_4 : f32 to vector<4x512xf32>
    %8 = arith.minimumf %7, %6 : vector<4x512xf32>
    %9 = arith.mulf %2, %8 : vector<4x512xf32>
    %cst_5 = arith.constant 0.166666672 : f32
    %10 = vector.broadcast %cst_5 : f32 to vector<4x512xf32>
    %11 = arith.mulf %9, %10 : vector<4x512xf32>
    %c0_6 = arith.constant 0 : index
    %c0_7 = arith.constant 0 : index
    %12 = vector.load %arg3[%c0_6, %c0_7] : memref<4x512xf32, #tpu.memory_space<vmem>>, vector<4x512xf32>
    tpu.vector_store %arg3[%c0_6, %c0_7], %11 {strides = array<i32>} : memref<4x512xf32, #tpu.memory_space<vmem>>, vector<4x512xf32>,
    return
  }
  func.func @transform_0(%arg0: i32) -> (i32, i32) {
    %c0_i32 = arith.constant 0 : i32
    %c0_i32_0 = arith.constant 0 : i32
    return %arg0, %c0_i32 : i32, i32
  }
  func.func @transform_1(%arg0: i32) -> (i32, i32) {
    %c0_i32 = arith.constant 0 : i32
    %c0_i32_0 = arith.constant 0 : i32
    return %arg0, %c0_i32 : i32, i32
  }
  func.func @transform_2(%arg0: i32) -> (i32, i32) {
    %c0_i32 = arith.constant 0 : i32
    %c0_i32_0 = arith.constant 0 : i32
    return %arg0, %c0_i32 : i32, i32
  }
}

</mosaic_0001>

<llo_original>
// kernel: tpu_custom_call.1
$region0: #{tpu_custom_call.1}
  #allocation0 [shape = 'u32[]', space=smem, size = 0x4, offset = 0x4, fixed_abs, tag = 'smem constant byte address 0x4 - core index']
  #allocation1 [shape = 'u32[144,128]{1,0:T(1,128)}', space=vmem, size = 0x12000, scoped, tag = 'internal scratch']
  %s0 = inlined_call_operand.hbm [shape: f32[4,512], index: 0, kind: input, shape index: {}]
  %s1 = inlined_call_operand.hbm [shape: f32[4,512], index: 1, kind: input, shape index: {}]
  %s2 = inlined_call_operand.hbm [shape: f32[4,512], index: 2, kind: output, shape index: {}]
  %s3 = sld [smem:[#allocation0]]
  $region26: #{tpu_custom_call.1} parent=0
    _
  %s5 = ssub.s32 1, %s3
  %s6 = scalar_select 0, %s5, %s3
  $region1: #{tpu_custom_call.1} parent=0
    #allocation2 [shape = 'u8[8192]{0}', space=vmem, size = 0x2000, scoped, tag = 'input window, operand 0, single buffered']
    #allocation3 [shape = 's32[1]{0}', space=sflag, size = 0x4, scoped, tag = 'scoped memory for tpu_custom_call.1']
    #allocation4 [shape = 's32[1]{0}', space=sflag, size = 0x4, scoped, tag = 'scoped memory for tpu_custom_call.1']
    #allocation5 [shape = 'u8[8192]{0}', space=vmem, size = 0x2000, scoped, tag = 'input window, operand 1, single buffered']
    #allocation6 [shape = 's32[1]{0}', space=sflag, size = 0x4, scoped, tag = 'scoped memory for tpu_custom_call.1']
    #allocation7 [shape = 'u8[8192]{0}', space=vmem, size = 0x2000, scoped, tag = 'output window, operand 0, single buffered']
    %7 = vsyncpa [#allocation3], 0
    %8 = vsyncpa [#allocation6], 0
    %9 = vsyncpa [#allocation4], 0
    // Predicated region
    $region2: #{tpu_custom_call.1} parent=1 // pred_check
      _
    $region3: #{tpu_custom_call.1} parent=1 // pred_check_branch
      %11 = sbr.rel (0) target = $region5
    $region4: #{tpu_custom_call.1} parent=1 // pred_region
      %s13 = ssub.s32 256, 256
      %14 = vsyncadd [#allocation3], %s13
      %s16 = sshll.u32 [#allocation2], 4
      %s17 = int_to_ptr.vmem [resolvable:$true] %s16
      %19 = dma.hbm_to_vmem [thread:$0]  %s0, 256, %s17, [#allocation3]
    $region5: #{tpu_custom_call.1} parent=1 // pred_fallthru
      _
    // Predicated region
    $region6: #{tpu_custom_call.1} parent=1 // pred_check
      _
    $region7: #{tpu_custom_call.1} parent=1 // pred_check_branch
      %21 = sbr.rel (0) target = $region9
    $region8: #{tpu_custom_call.1} parent=1 // pred_region
      %s23 = ssub.s32 256, 256
      %24 = vsyncadd [#allocation6], %s23
      %s26 = sshll.u32 [#allocation5], 4
      %s27 = int_to_ptr.vmem [resolvable:$true] %s26
      %29 = dma.hbm_to_vmem [thread:$0]  %s1, 256, %s27, [#allocation6]
    $region9: #{tpu_custom_call.1} parent=1 // pred_fallthru
      _
    // Predicated region
    $region10: #{tpu_custom_call.1} parent=1 // pred_check
      _
    $region11: #{tpu_custom_call.1} parent=1 // pred_check_branch
      %31 = sbr.rel (0) target = $region13
    $region12: #{tpu_custom_call.1} parent=1 // pred_region
      %32 = dma.done [#allocation3], 256
    $region13: #{tpu_custom_call.1} parent=1 // pred_fallthru
      _
    // Predicated region
    $region14: #{tpu_custom_call.1} parent=1 // pred_check
      _
    $region15: #{tpu_custom_call.1} parent=1 // pred_check_branch
      %34 = sbr.rel (0) target = $region17
    $region16: #{tpu_custom_call.1} parent=1 // pred_region
      %35 = dma.done [#allocation6], 256
    $region17: #{tpu_custom_call.1} parent=1 // pred_fallthru
      _
    %v36 = vld [vmem:[#allocation2] sm:$0xff]
    %v37 = vld [vmem:[#allocation2 + $0x8] sm:$0xff]
    %v38 = vld [vmem:[#allocation5] sm:$0xff]
    %v39 = vld [vmem:[#allocation5 + $0x8] sm:$0xff]
    %v40 = vadd.f32 %v36, %v38
    %v41 = vadd.f32 %v37, %v39
    %v42 = vadd.f32 %v40, 3.0
    %v43 = vadd.f32 %v41, 3.0
    %v44 = vmax.f32 %v42, 0.0
    %v45 = vmax.f32 %v43, 0.0
    %v46 = vmin.f32 %v44, 6.0
    %v47 = vmin.f32 %v45, 6.0
    %v48 = vmul.f32 %v40, %v46
    %v49 = vmul.f32 %v41, %v47
    %v50 = vmul.f32 %v48, 0.16666667
    %v51 = vmul.f32 %v49, 0.16666667
    %52 = vst [vmem:[#allocation7] sm:$0xff] %v50
    %53 = vst [vmem:[#allocation7 + $0x8] sm:$0xff] %v51
    // Predicated region
    $region18: #{tpu_custom_call.1} parent=1 // pred_check
      _
    $region19: #{tpu_custom_call.1} parent=1 // pred_check_branch
      %55 = sbr.rel (0) target = $region21
    $region20: #{tpu_custom_call.1} parent=1 // pred_region
      %s57 = ssub.s32 256, 256
      %58 = vsyncadd [#allocation4], %s57
      %s60 = sshll.u32 [#allocation7], 4
      %s61 = int_to_ptr.vmem [resolvable:$true] %s60
      %63 = dma.vmem_to_hbm [thread:$0]  %s61, 256, %s2, [#allocation4]
    $region21: #{tpu_custom_call.1} parent=1 // pred_fallthru
      _
    // Predicated region
    $region22: #{tpu_custom_call.1} parent=1 // pred_check
      _
    $region23: #{tpu_custom_call.1} parent=1 // pred_check_branch
      %65 = sbr.rel (0) target = $region25
    $region24: #{tpu_custom_call.1} parent=1 // pred_region
      %66 = dma.done [#allocation4], 256
    $region25: #{tpu_custom_call.1} parent=1 // pred_fallthru
      _
    %67 = vsyncpa [#allocation3], 1
    %68 = vsyncpa [#allocation6], 1
    %69 = vsyncpa [#allocation4], 1

</llo_original>
